<compile_context>
chip_gen: v7x
topology: tpu7x:2x2x1
jax: 0.10.0
libtpu: 0.0.40
codegen_flags: <defaults>
</compile_context>

<pallas_src>
import jax
import jax.numpy as jnp
from jax.experimental import pallas as pl
from jax.experimental.pallas import tpu as pltpu


# ---------------------------------------------------------------------------
# Module path (x == 0): one tiny Pallas step computes the per-token constant.
# ---------------------------------------------------------------------------
def _zero_input_const_kernel(ffw_ref, ffb_ref, cw_ref, cb_ref, o_ref):
    # ffw_ref: (layers, D, D) torch layout (out_features, in_features)
    # ffb_ref: (layers, D, 1) feedforward biases (columns)
    # cw_ref : (D, 1)         classifier weight (column)
    # cb_ref : (1,) in SMEM   classifier bias (scalar)
    # o_ref  : (1, 128)       all lanes hold the same constant
    d = ffw_ref.shape[1]
    lanes = o_ref.shape[-1]
    n_layers = ffw_ref.shape[0]
    # Layer 0 applied to x == 0 is just ReLU(b0), identical for every token.
    h = jnp.broadcast_to(jnp.maximum(ffb_ref[0], 0.0), (d, lanes))
    for i in range(1, n_layers):                       # static unroll, layers is small
        h = jnp.dot(ffw_ref[i], h, preferred_element_type=jnp.float32)
        h = jnp.maximum(h + ffb_ref[i], 0.0)
    row = jnp.sum(h * cw_ref[...], axis=0, keepdims=True) + cb_ref[0]
    o_ref[...] = row


def _zero_input_constant(ff_w, ff_b, cls_w, cls_b):
    layers, d, _ = ff_w.shape
    cb = cls_b.reshape(1).astype(jnp.float32)
    if layers == 0:                                    # FeedForward(0 layers) is identity
        return cb[0]
    ffw = ff_w.astype(jnp.float32)
    ffb_col = ff_b.reshape(layers, d, 1).astype(jnp.float32)
    cw_col = cls_w.reshape(d, 1).astype(jnp.float32)
    out = pl.pallas_call(
        _zero_input_const_kernel,
        out_shape=jax.ShapeDtypeStruct((1, 128), jnp.float32),
        grid_spec=pltpu.PrefetchScalarGridSpec(
            num_scalar_prefetch=0,
            grid=(1,),
            in_specs=[
                pl.BlockSpec((layers, d, d), lambda i: (0, 0, 0)),
                pl.BlockSpec((layers, d, 1), lambda i: (0, 0, 0)),
                pl.BlockSpec((d, 1), lambda i: (0, 0)),
                pl.BlockSpec(memory_space=pltpu.MemorySpace.SMEM),
            ],
            out_specs=pl.BlockSpec((1, 128), lambda i: (0, 0)),
        ),
        compiler_params=pltpu.CompilerParams(
            dimension_semantics=("arbitrary",),
            vmem_limit_bytes=4 * 1024 * 1024,
        ),
    )(ffw, ffb_col, cw_col, cb)
    return out[0, 0]


def model_feedforward_none_forward(gi, ge, l, ff_w, ff_b, cls_w, cls_b):
    """Pallas port of Model_feedforward_none.forward (gi/ge/l only fix shapes)."""
    del ge, l                                          # values unused by the module
    B, L = gi.shape
    c = _zero_input_constant(ff_w, ff_b, cls_w, cls_b)
    return jnp.full((B, L), c, dtype=jnp.float32)


# ---------------------------------------------------------------------------
# General (non-zero activation) fused FeedForward + Classifier kernel.
# ---------------------------------------------------------------------------
def _round_up(x, m):
    return ((x + m - 1) // m) * m


def _pick_tm(m):
    """Lane-dense M tile: big enough to amortize ~0.35us/grid-step, small enough
    for VMEM on every generation, and (when M permits) >= ~4 grid steps so both
    v7x TensorCores get work via dimension_semantics=('parallel',)."""
    n128 = -(-m // 128)                   # number of 128-token groups
    k = max(1, min(32, -(-n128 // 4)))    # aim for >=4 steps, cap tm at 4096 tokens
    if k > 4:
        k = -(-k // 4) * 4                # keep tm a multiple of the 512-token chunk
    return 128 * k


def _make_ff_classifier_kernel(n_layers, chunk, use_bf16):
    def kernel(x_ref, ffw_ref, ffb_ref, cw_ref, cb_ref, o_ref):
        # x_ref : (tm, D) token-major tile (no wrapper transpose / extra HBM pass)
        # o_ref : (1, 1, tm) lane-dense output tile
        tm = x_ref.shape[0]
        n_chunks = tm // chunk

        @pl.loop(0, n_chunks)
        def _(c):
            start = pl.multiple_of(c * chunk, chunk)
            # Feature-major activations (tokens in lanes); the (chunk,D)->(D,chunk)
            # transpose rides the otherwise-idle XLU slot.
            h = jnp.transpose(x_ref[pl.ds(start, chunk), :])      # (D, chunk)
            for i in range(n_layers):                             # static unroll
                w = ffw_ref[i]
                if use_bf16:
                    acc = jnp.dot(w.astype(jnp.bfloat16), h.astype(jnp.bfloat16),
                                  preferred_element_type=jnp.float32)
                else:
                    acc = jnp.dot(w, h, preferred_element_type=jnp.float32)
                h = jnp.maximum(acc + ffb_ref[i], 0.0)            # bias bcast + ReLU (VPU)
            # D->1 classifier: VPU multiply + sublane reduce (keep MXU out of N=1).
            row = jnp.sum(h * cw_ref[...], axis=0, keepdims=True) + cb_ref[0]
            o_ref[:, :, pl.ds(start, chunk)] = row.reshape(1, 1, chunk)

    return kernel


def feedforward_classifier_tokens(x_md, ff_w, ff_b, cls_w, cls_b, use_bf16=True):
    """x_md: (M, D) token-major activations. Returns the (M,) classifier outputs."""
    M, D = x_md.shape
    layers = ff_w.shape[0]
    tm = _pick_tm(M)
    chunk = min(tm, 512)          # bounds vreg pressure: h = (D, chunk) <= 16 vregs
    m_pad = _round_up(M, tm)
    x_md = x_md.astype(jnp.float32)
    if m_pad != M:
        x_md = jnp.pad(x_md, ((0, m_pad - M), (0, 0)))
    n_steps = m_pad // tm

    ffw = ff_w.astype(jnp.float32)
    ffb_col = ff_b.reshape(layers, D, 1).astype(jnp.float32)
    cw_col = cls_w.reshape(D, 1).astype(jnp.float32)
    cb = cls_b.reshape(1).astype(jnp.float32)

    out = pl.pallas_call(
        _make_ff_classifier_kernel(layers, chunk, use_bf16),
        out_shape=jax.ShapeDtypeStruct((n_steps, 1, tm), jnp.float32),
        grid_spec=pltpu.PrefetchScalarGridSpec(
            num_scalar_prefetch=0,
            grid=(n_steps,),
            in_specs=[
                pl.BlockSpec((tm, D), lambda i: (i, 0)),            # activations (tiled)
                pl.BlockSpec((layers, D, D), lambda i: (0, 0, 0)),  # FF weights (resident)
                pl.BlockSpec((layers, D, 1), lambda i: (0, 0, 0)),  # FF biases (resident)
                pl.BlockSpec((D, 1), lambda i: (0, 0)),             # classifier weight
                pl.BlockSpec(memory_space=pltpu.MemorySpace.SMEM),  # classifier bias
            ],
            out_specs=pl.BlockSpec((1, 1, tm), lambda i: (i, 0, 0)),
        ),
        compiler_params=pltpu.CompilerParams(
            dimension_semantics=("parallel",),        # shards M across v7x's 2 TCs
            vmem_limit_bytes=32 * 1024 * 1024,        # v5e scoped default is only 16 MiB
        ),
    )(x_md, ffw, ffb_col, cw_col, cb)
    return out.reshape(m_pad)[:M]


def feedforward_classifier_bld(x_bld, ff_w, ff_b, cls_w, cls_b, use_bf16=True):
    """General (B, L, D) entry point (non-zero activations); token-major, no transpose glue."""
    B, L, D = x_bld.shape
    o = feedforward_classifier_tokens(x_bld.reshape(B * L, D),
                                      ff_w, ff_b, cls_w, cls_b, use_bf16=use_bf16)
    return o.reshape(B, L)


# ---------------------------------------------------------------------------
# Plain-JAX reference for validation.
# ---------------------------------------------------------------------------
def _reference_forward(x_bld, ff_w, ff_b, cls_w, cls_b):
    h = x_bld.astype(jnp.float32)
    for i in range(ff_w.shape[0]):
        h = jnp.maximum(
            jnp.einsum("bld,od->blo", h, ff_w[i], precision="highest") + ff_b[i], 0.0)
    o = jnp.einsum("bld,od->blo", h, cls_w, precision="highest") + cls_b
    return o[..., 0]


if __name__ == "__main__":
    B, L, D, LAYERS = 2, 8, 32, 3

    key = jax.random.PRNGKey(0)
    k_gi, k_ge, k_l, k_fw, k_fb, k_cw, k_cb, k_x, k_x2 = jax.random.split(key, 9)

    # Module inputs (only shapes matter for the reference forward).
    gi = jax.random.randint(k_gi, (B, L), 0, 1000, dtype=jnp.int32)
    ge = jax.random.normal(k_ge, (B, L), dtype=jnp.float32)
    l = jax.random.randint(k_l, (B,), 1, L + 1, dtype=jnp.int32)

    # PyTorch-style Linear init bound.
    bound = 1.0 / (D ** 0.5)
    ff_w = jax.random.uniform(k_fw, (LAYERS, D, D), jnp.float32, -bound, bound)
    ff_b = jax.random.uniform(k_fb, (LAYERS, D), jnp.float32, -bound, bound)
    cls_w = jax.random.uniform(k_cw, (1, D), jnp.float32, -bound, bound)
    cls_b = jax.random.uniform(k_cb, (1,), jnp.float32, -bound, bound)

    # 1) Full module forward (x == zeros): constant-folded, no zeros DMA.
    out = jax.block_until_ready(
        model_feedforward_none_forward(gi, ge, l, ff_w, ff_b, cls_w, cls_b))
    ref = _reference_forward(jnp.zeros((B, L, D), jnp.float32), ff_w, ff_b, cls_w, cls_b)
    assert out.shape == (B, L)
    assert jnp.allclose(out, ref, atol=1e-4, rtol=1e-4)

    # 2) Tiled kernel numerics on non-trivial activations (f32 MXU path), small shape.
    x_small = jax.random.normal(k_x, (B, L, D), dtype=jnp.float32)
    out_f32 = jax.block_until_ready(
        feedforward_classifier_bld(x_small, ff_w, ff_b, cls_w, cls_b, use_bf16=False))
    ref_small = _reference_forward(x_small, ff_w, ff_b, cls_w, cls_b)
    assert out_f32.shape == (B, L)
    assert jnp.allclose(out_f32, ref_small, atol=1e-3, rtol=1e-3)

    # 3) Exercise multi-step grid + inner 512-token chunk loop + bf16 MXU operands.
    B2, L2 = 4, 600                                   # M=2400 -> tm=1024, 3 grid steps
    x_big = jax.random.normal(k_x2, (B2, L2, D), dtype=jnp.float32)
    out_bf16 = jax.block_until_ready(
        feedforward_classifier_bld(x_big, ff_w, ff_b, cls_w, cls_b, use_bf16=True))
    ref_big = _reference_forward(x_big, ff_w, ff_b, cls_w, cls_b)
    assert out_bf16.shape == (B2, L2)
    assert jnp.allclose(out_bf16, ref_big, atol=2e-2, rtol=2e-2)

    print("KERNEL_OK")
</pallas_src>

<mosaic_0001>
module attributes {stable_mosaic.version = 11 : i64} {
  func.func @_zero_input_const_kernel(%arg0: i32, %arg1: memref<3x32x32xf32, #tpu.memory_space<vmem>>, %arg2: memref<3x32x1xf32, #tpu.memory_space<vmem>>, %arg3: memref<32x1xf32, #tpu.memory_space<vmem>>, %arg4: memref<1xf32, #tpu.memory_space<smem>>, %arg5: memref<1x128xf32, #tpu.memory_space<vmem>>) attributes {dimension_semantics = [#tpu.dimension_semantics<arbitrary>], iteration_bounds = array<i64: 1>, scalar_prefetch = 0 : i64, scratch_operands = 0 : i64, tpu.core_type = #tpu.core_type<tc>, window_params = [{pipeline_mode = #tpu.pipeline_mode<synchronous>, transform_indices = @transform_0, window_bounds = array<i64: 3, 32, 32>}, {pipeline_mode = #tpu.pipeline_mode<synchronous>, transform_indices = @transform_1, window_bounds = array<i64: 3, 32, 1>}, {pipeline_mode = #tpu.pipeline_mode<synchronous>, transform_indices = @transform_2, window_bounds = array<i64: 32, 1>}, {transform_indices = @transform_3, window_bounds = array<i64: 1>}, {pipeline_mode = #tpu.pipeline_mode<synchronous>, transform_indices = @transform_4, window_bounds = array<i64: 1, 128>}]} {
    %c0 = arith.constant 0 : index
    %c0_0 = arith.constant 0 : index
    %c0_1 = arith.constant 0 : index
    %0 = vector.load %arg2[%c0, %c0_0, %c0_1] : memref<3x32x1xf32, #tpu.memory_space<vmem>>, vector<1x32x1xf32>
    %1 = vector.shape_cast %0 : vector<1x32x1xf32> to vector<32x1xf32>
    %cst = arith.constant 0.000000e+00 : f32
    %2 = vector.broadcast %cst : f32 to vector<32x1xf32>
    %3 = arith.maximumf %1, %2 : vector<32x1xf32>
    %4 = vector.shape_cast %3 : vector<32x1xf32> to vector<32x1xf32>
    %5 = vector.broadcast %4 : vector<32x1xf32> to vector<32x128xf32>
    %c1 = arith.constant 1 : index
    %c0_2 = arith.constant 0 : index
    %c0_3 = arith.constant 0 : index
    %6 = vector.load %arg1[%c1, %c0_2, %c0_3] : memref<3x32x32xf32, #tpu.memory_space<vmem>>, vector<1x32x32xf32>
    %7 = vector.shape_cast %6 : vector<1x32x32xf32> to vector<32x32xf32>
    %cst_4 = arith.constant dense<0.000000e+00> : vector<32x128xf32>
    %8 = tpu.matmul %7, %5, %cst_4 {dimension_numbers = #tpu.dot_dimension_numbers<[1], [0], [0], [1], [0, 0, 1, 1], [], []>} : vector<32x32xf32>, vector<32x128xf32>, vector<32x128xf32> -> vector<32x128xf32>
    %c1_5 = arith.constant 1 : index
    %c0_6 = arith.constant 0 : index
    %c0_7 = arith.constant 0 : index
    %9 = vector.load %arg2[%c1_5, %c0_6, %c0_7] : memref<3x32x1xf32, #tpu.memory_space<vmem>>, vector<1x32x1xf32>
    %10 = vector.shape_cast %9 : vector<1x32x1xf32> to vector<32x1xf32>
    %11 = vector.broadcast %10 : vector<32x1xf32> to vector<32x128xf32>
    %12 = arith.addf %8, %11 : vector<32x128xf32>
    %cst_8 = arith.constant 0.000000e+00 : f32
    %13 = vector.broadcast %cst_8 : f32 to vector<32x128xf32>
    %14 = arith.maximumf %12, %13 : vector<32x128xf32>
    %c2 = arith.constant 2 : index
    %c0_9 = arith.constant 0 : index
    %c0_10 = arith.constant 0 : index
    %15 = vector.load %arg1[%c2, %c0_9, %c0_10] : memref<3x32x32xf32, #tpu.memory_space<vmem>>, vector<1x32x32xf32>
    %16 = vector.shape_cast %15 : vector<1x32x32xf32> to vector<32x32xf32>
    %cst_11 = arith.constant dense<0.000000e+00> : vector<32x128xf32>
    %17 = tpu.matmul %16, %14, %cst_11 {dimension_numbers = #tpu.dot_dimension_numbers<[1], [0], [0], [1], [0, 0, 1, 1], [], []>} : vector<32x32xf32>, vector<32x128xf32>, vector<32x128xf32> -> vector<32x128xf32>
    %c2_12 = arith.constant 2 : index
    %c0_13 = arith.constant 0 : index
    %c0_14 = arith.constant 0 : index
    %18 = vector.load %arg2[%c2_12, %c0_13, %c0_14] : memref<3x32x1xf32, #tpu.memory_space<vmem>>, vector<1x32x1xf32>
    %19 = vector.shape_cast %18 : vector<1x32x1xf32> to vector<32x1xf32>
    %20 = vector.broadcast %19 : vector<32x1xf32> to vector<32x128xf32>
    %21 = arith.addf %17, %20 : vector<32x128xf32>
    %cst_15 = arith.constant 0.000000e+00 : f32
    %22 = vector.broadcast %cst_15 : f32 to vector<32x128xf32>
    %23 = arith.maximumf %21, %22 : vector<32x128xf32>
    %c0_16 = arith.constant 0 : index
    %c0_17 = arith.constant 0 : index
    %24 = vector.load %arg3[%c0_16, %c0_17] : memref<32x1xf32, #tpu.memory_space<vmem>>, vector<32x1xf32>
    %25 = vector.broadcast %24 : vector<32x1xf32> to vector<32x128xf32>
    %26 = arith.mulf %23, %25 : vector<32x128xf32>
    %cst_18 = arith.constant dense<0.000000e+00> : vector<128xf32>
    %27 = vector.multi_reduction <add>, %26, %cst_18 [0] : vector<32x128xf32> to vector<128xf32>
    %28 = vector.shape_cast %27 : vector<128xf32> to vector<1x128xf32>
    %c0_19 = arith.constant 0 : index
    %29 = memref.load %arg4[%c0_19] : memref<1xf32, #tpu.memory_space<smem>>
    %30 = vector.broadcast %29 : f32 to vector<1x128xf32>
    %31 = arith.addf %28, %30 : vector<1x128xf32>
    %c0_20 = arith.constant 0 : index
    %c0_21 = arith.constant 0 : index
    %32 = vector.load %arg5[%c0_20, %c0_21] : memref<1x128xf32, #tpu.memory_space<vmem>>, vector<1x128xf32>
    tpu.vector_store %arg5[%c0_20, %c0_21], %31 {strides = array<i32>} : memref<1x128xf32, #tpu.memory_space<vmem>>, vector<1x128xf32>,
    return
  }
  func.func @transform_0(%arg0: i32) -> (i32, i32, i32) {
    %c0_i32 = arith.constant 0 : i32
    %c0_i32_0 = arith.constant 0 : i32
    %c0_i32_1 = arith.constant 0 : i32
    %c0_i32_2 = arith.constant 0 : i32
    return %c0_i32, %c0_i32_0, %c0_i32_1 : i32, i32, i32
  }
  func.func @transform_1(%arg0: i32) -> (i32, i32, i32) {
    %c0_i32 = arith.constant 0 : i32
    %c0_i32_0 = arith.constant 0 : i32
    %c0_i32_1 = arith.constant 0 : i32
    %c0_i32_2 = arith.constant 0 : i32
    return %c0_i32, %c0_i32_0, %c0_i32_1 : i32, i32, i32
  }
  func.func @transform_2(%arg0: i32) -> (i32, i32) {
    %c0_i32 = arith.constant 0 : i32
    %c0_i32_0 = arith.constant 0 : i32
    %c0_i32_1 = arith.constant 0 : i32
    return %c0_i32, %c0_i32_0 : i32, i32
  }
  func.func @transform_3(%arg0: i32) -> i32 {
    %c0_i32 = arith.constant 0 : i32
    %c0_i32_0 = arith.constant 0 : i32
    return %c0_i32 : i32
  }
  func.func @transform_4(%arg0: i32) -> (i32, i32) {
    %c0_i32 = arith.constant 0 : i32
    %c0_i32_0 = arith.constant 0 : i32
    %c0_i32_1 = arith.constant 0 : i32
    return %c0_i32, %c0_i32_0 : i32, i32
  }
}

</mosaic_0001>

<llo_original>
// kernel: tpu_custom_call.1
$region0: #{tpu_custom_call.1}
  #allocation0 [shape = 'u32[]', space=smem, size = 0x4, offset = 0x4, fixed_abs, tag = 'smem constant byte address 0x4 - core index']
  #allocation1 [shape = 'u32[144,128]{1,0:T(1,128)}', space=vmem, size = 0x12000, scoped, tag = 'internal scratch']
  #allocation2 [shape = 'f32[1]{0:T(128)S(6)}', space=smem, size = 0x200, scoped, tag = 'scoped memory for tpu_custom_call.1']
  %s0 = inlined_call_operand.vmem [shape: f32[3,32,32], index: 0, kind: input, shape index: {}]
  %s1 = inlined_call_operand.vmem [shape: f32[3,32,1], index: 1, kind: input, shape index: {}]
  %s2 = inlined_call_operand.vmem [shape: f32[32,1], index: 2, kind: input, shape index: {}]
  %s3 = inlined_call_operand.<no memory space> [shape: f32[1], index: 3, kind: input, shape index: {}]
  %s4 = inlined_call_operand.hbm [shape: f32[1,128], index: 4, kind: output, shape index: {}]
  %s5 = sld [smem:[#allocation0]]
  $region26: #{tpu_custom_call.1} parent=0
    _
  %s7 = ssub.s32 1, %s5
  %s8 = scalar_select 0, %s7, %s5
  %9 = sst [smem:[#allocation2]] %s3
  $region1: #{tpu_custom_call.1} parent=0
    #allocation3 [shape = 'u8[512]{0}', space=vmem, size = 0x400, scoped, tag = 'output window, operand 0, single buffered']
    #allocation4 [shape = 's32[1]{0}', space=sflag, size = 0x4, scoped, tag = 'scoped memory for tpu_custom_call.1']
    %10 = vsyncpa [#allocation4], 0
    // Predicated region
    $region2: #{tpu_custom_call.1} parent=1 // pred_check
      _
    $region3: #{tpu_custom_call.1} parent=1 // pred_check_branch
      %12 = sbr.rel (0) target = $region5
    $region4: #{tpu_custom_call.1} parent=1 // pred_region
      _
    $region5: #{tpu_custom_call.1} parent=1 // pred_fallthru
      _
    // Predicated region
    $region6: #{tpu_custom_call.1} parent=1 // pred_check
      _
    $region7: #{tpu_custom_call.1} parent=1 // pred_check_branch
      %14 = sbr.rel (0) target = $region9
    $region8: #{tpu_custom_call.1} parent=1 // pred_region
      _
    $region9: #{tpu_custom_call.1} parent=1 // pred_fallthru
      _
    // Predicated region
    $region10: #{tpu_custom_call.1} parent=1 // pred_check
      _
    $region11: #{tpu_custom_call.1} parent=1 // pred_check_branch
      %16 = sbr.rel (0) target = $region13
    $region12: #{tpu_custom_call.1} parent=1 // pred_region
      _
    $region13: #{tpu_custom_call.1} parent=1 // pred_fallthru
      _
    // Predicated region
    $region14: #{tpu_custom_call.1} parent=1 // pred_check
      _
    $region15: #{tpu_custom_call.1} parent=1 // pred_check_branch
      %18 = sbr.rel (0) target = $region17
    $region16: #{tpu_custom_call.1} parent=1 // pred_region
      _
    $region17: #{tpu_custom_call.1} parent=1 // pred_fallthru
      _
    %v19 = vld [vmem:[%s1] sm:$0xff]
    %v20 = vld [vmem:[%s1 + $0x8] sm:$0xff]
    %v21 = vld [vmem:[%s1 + $0x10] sm:$0xff]
    %v22 = vld [vmem:[%s1 + $0x18] sm:$0xff]
    %v23 = vmax.f32 %v19, 0.0
    %v24 = vmax.f32 %v20, 0.0
    %v25 = vmax.f32 %v21, 0.0
    %v26 = vmax.f32 %v22, 0.0
    %28 = vset.pattern.permute.xlu0 0
    %29 = vperm.xlu0 %28, %v23
    %v30 = vpop.permute.xlu0 %29
    %33 = vset.pattern.permute.xlu0 0
    %34 = vperm.xlu0 %33, %v24
    %v35 = vpop.permute.xlu0 %34
    %38 = vset.pattern.permute.xlu0 0
    %39 = vperm.xlu0 %38, %v25
    %v40 = vpop.permute.xlu0 %39
    %43 = vset.pattern.permute.xlu0 0
    %44 = vperm.xlu0 %43, %v26
    %v45 = vpop.permute.xlu0 %44
    %s47 = scalar_lea.vmem %s0, 32
    %v48 = vld [vmem:[%s47] sm:$0xff]
    %v49 = vld [vmem:[%s47 + $0x8] sm:$0xff]
    %v50 = vld [vmem:[%s47 + $0x10] sm:$0xff]
    %v51 = vld [vmem:[%s47 + $0x18] sm:$0xff]
    %s52 = scalar_lea.vmem %s1, 32
    %v53 = vld [vmem:[%s52] sm:$0xff]
    %v54 = vld [vmem:[%s52 + $0x8] sm:$0xff]
    %v55 = vld [vmem:[%s52 + $0x10] sm:$0xff]
    %v56 = vld [vmem:[%s52 + $0x18] sm:$0xff]
    %58 = vset.pattern.permute.xlu0 0
    %59 = vperm.xlu0 %58, %v53
    %v60 = vpop.permute.xlu0 %59
    %63 = vset.pattern.permute.xlu0 0
    %64 = vperm.xlu0 %63, %v54
    %v65 = vpop.permute.xlu0 %64
    %68 = vset.pattern.permute.xlu0 0
    %69 = vperm.xlu0 %68, %v55
    %v70 = vpop.permute.xlu0 %69
    %73 = vset.pattern.permute.xlu0 0
    %74 = vperm.xlu0 %73, %v56
    %v75 = vpop.permute.xlu0 %74
    %vm77 = vcmask 261120
    %v79 = vsel %vm77, %v48, 0
    %v82 = vsel %vm77, %v49, 0
    %v85 = vsel %vm77, %v50, 0
    %v88 = vsel %vm77, %v51, 0
    %90 = vmatprep.subr.mxu0 0.0
    %91 = vmatpush1.msra.mxu0 %v30
    %92 = vmatprep.subr.mxu0 0.0
    %93 = vmatpush1.msra.mxu0 %v35
    %94 = vmatprep.subr.mxu0 0.0
    %95 = vmatpush1.msra.mxu0 %v40
    %96 = vmatprep.subr.mxu0 0.0
    %97 = vmatpush1.msra.mxu0 %v45
    %98 = vmatprep.subr.mxu0 0.0
    %99 = vmatpush1.msra.mxu0 0.0
    %100 = vmatprep.subr.mxu0 0.0
    %101 = vmatpush1.msra.mxu0 0.0
    %102 = vmatprep.subr.mxu0 0.0
    %103 = vmatpush1.msra.mxu0 0.0
    %104 = vmatprep.subr.mxu0 0.0
    %105 = vmatpush1.msra.mxu0 0.0
    %106 = vmatprep.subr.mxu0 0.0
    %107 = vmatpush1.msra.mxu0 0.0
    %108 = vmatprep.subr.mxu0 0.0
    %109 = vmatpush1.msra.mxu0 0.0
    %110 = vmatprep.subr.mxu0 0.0
    %111 = vmatpush1.msra.mxu0 0.0
    %112 = vmatprep.subr.mxu0 0.0
    %113 = vmatpush1.msra.mxu0 0.0
    %114 = vmatprep.subr.mxu0 0.0
    %115 = vmatpush1.msra.mxu0 0.0
    %116 = vmatprep.subr.mxu0 0.0
    %117 = vmatpush1.msra.mxu0 0.0
    %118 = vmatprep.subr.mxu0 0.0
    %119 = vmatpush1.msra.mxu0 0.0
    %120 = vmatprep.subr.mxu0 0.0
    %121 = vmatpush1.msra.mxu0 0.0
    %122 = vmatprep.subr.mxu0 0.0
    %123 = vmatpush1.msra.mxu0 0.0
    %124 = vmatprep.subr.mxu0 0.0
    %125 = vmatpush1.msra.mxu0 0.0
    %126 = vmatprep.subr.mxu0 0.0
    %127 = vmatpush1.msra.mxu0 0.0
    %128 = vmatprep.subr.mxu0 0.0
    %129 = vmatpush1.msra.mxu0 0.0
    %130 = vmatprep.subr.mxu0 0.0
    %131 = vmatpush1.msra.mxu0 0.0
    %132 = vmatprep.subr.mxu0 0.0
    %133 = vmatpush1.msra.mxu0 0.0
    %134 = vmatprep.subr.mxu0 0.0
    %135 = vmatpush1.msra.mxu0 0.0
    %136 = vmatprep.subr.mxu0 0.0
    %137 = vmatpush1.msra.mxu0 0.0
    %138 = vmatprep.subr.mxu0 0.0
    %139 = vmatpush1.msra.mxu0 0.0
    %140 = vmatprep.subr.mxu0 0.0
    %141 = vmatpush1.msra.mxu0 0.0
    %142 = vmatprep.subr.mxu0 0.0
    %143 = vmatpush1.msra.mxu0 0.0
    %144 = vmatprep.subr.mxu0 0.0
    %145 = vmatpush1.msra.mxu0 0.0
    %146 = vmatprep.subr.mxu0 0.0
    %147 = vmatpush1.msra.mxu0 0.0
    %148 = vmatprep.subr.mxu0 0.0
    %149 = vmatpush1.msra.mxu0 0.0
    %150 = vmatprep.subr.mxu0 0.0
    %151 = vmatpush1.msra.mxu0 0.0
    %152 = vmatprep.subr.mxu0 0.0
    %153 = vmatpush1.msra.mxu0 0.0
    %154 = vmatprep.mubr.f32.mxu0 0.0
    %155 = vmatmul.mubr.f32.gmra.mrb[0].mxu0 %v79
    %v156 = vpop.f32.mrb[0].mxu0
    %v157 = vadd.f32 %v60, %v156
    %v158 = vpop.f32.mrb[0].mxu0
    %159 = vmatprep.mubr.f32.mxu0 0.0
    %160 = vmatmul.mubr.f32.gmra.mrb[0].mxu0 %v82
    %v161 = vpop.f32.mrb[0].mxu0
    %v162 = vadd.f32 %v65, %v161
    %v163 = vpop.f32.mrb[0].mxu0
    %164 = vmatprep.mubr.f32.mxu0 0.0
    %165 = vmatmul.mubr.f32.gmra.mrb[0].mxu0 %v85
    %v166 = vpop.f32.mrb[0].mxu0
    %v167 = vadd.f32 %v70, %v166
    %v168 = vpop.f32.mrb[0].mxu0
    %169 = vmatprep.mubr.f32.mxu0 0.0
    %170 = vmatmul.mubr.f32.gmra.mrb[0].mxu0 %v88
    %v171 = vpop.f32.mrb[0].mxu0
    %v172 = vadd.f32 %v75, %v171
    %v173 = vpop.f32.mrb[0].mxu0
    %174 = vdwg.mxu0
    %v175 = vmax.f32 %v157, 0.0
    %v176 = vmax.f32 %v162, 0.0
    %v177 = vmax.f32 %v167, 0.0
    %v178 = vmax.f32 %v172, 0.0
    %s179 = scalar_lea.vmem %s0, 64
    %v180 = vld [vmem:[%s179] sm:$0xff]
    %v181 = vld [vmem:[%s179 + $0x8] sm:$0xff]
    %v182 = vld [vmem:[%s179 + $0x10] sm:$0xff]
    %v183 = vld [vmem:[%s179 + $0x18] sm:$0xff]
    %s184 = scalar_lea.vmem %s1, 64
    %v185 = vld [vmem:[%s184] sm:$0xff]
    %v186 = vld [vmem:[%s184 + $0x8] sm:$0xff]
    %v187 = vld [vmem:[%s184 + $0x10] sm:$0xff]
    %v188 = vld [vmem:[%s184 + $0x18] sm:$0xff]
    %190 = vset.pattern.permute.xlu0 0
    %191 = vperm.xlu0 %190, %v185
    %v192 = vpop.permute.xlu0 %191
    %195 = vset.pattern.permute.xlu0 0
    %196 = vperm.xlu0 %195, %v186
    %v197 = vpop.permute.xlu0 %196
    %200 = vset.pattern.permute.xlu0 0
    %201 = vperm.xlu0 %200, %v187
    %v202 = vpop.permute.xlu0 %201
    %205 = vset.pattern.permute.xlu0 0
    %206 = vperm.xlu0 %205, %v188
    %v207 = vpop.permute.xlu0 %206
    %v210 = vsel %vm77, %v180, 0
    %v213 = vsel %vm77, %v181, 0
    %v216 = vsel %vm77, %v182, 0
    %v219 = vsel %vm77, %v183, 0
    %221 = vmatprep.subr.mxu0 0.0
    %222 = vmatpush1.msra.mxu0 %v175
    %223 = vmatprep.subr.mxu0 0.0
    %224 = vmatpush1.msra.mxu0 %v176
    %225 = vmatprep.subr.mxu0 0.0
    %226 = vmatpush1.msra.mxu0 %v177
    %227 = vmatprep.subr.mxu0 0.0
    %228 = vmatpush1.msra.mxu0 %v178
    %229 = vmatprep.subr.mxu0 0.0
    %230 = vmatpush1.msra.mxu0 0.0
    %231 = vmatprep.subr.mxu0 0.0
    %232 = vmatpush1.msra.mxu0 0.0
    %233 = vmatprep.subr.mxu0 0.0
    %234 = vmatpush1.msra.mxu0 0.0
    %235 = vmatprep.subr.mxu0 0.0
    %236 = vmatpush1.msra.mxu0 0.0
    %237 = vmatprep.subr.mxu0 0.0
    %238 = vmatpush1.msra.mxu0 0.0
    %239 = vmatprep.subr.mxu0 0.0
    %240 = vmatpush1.msra.mxu0 0.0
    %241 = vmatprep.subr.mxu0 0.0
    %242 = vmatpush1.msra.mxu0 0.0
    %243 = vmatprep.subr.mxu0 0.0
    %244 = vmatpush1.msra.mxu0 0.0
    %245 = vmatprep.subr.mxu0 0.0
    %246 = vmatpush1.msra.mxu0 0.0
    %247 = vmatprep.subr.mxu0 0.0
    %248 = vmatpush1.msra.mxu0 0.0
    %249 = vmatprep.subr.mxu0 0.0
    %250 = vmatpush1.msra.mxu0 0.0
    %251 = vmatprep.subr.mxu0 0.0
    %252 = vmatpush1.msra.mxu0 0.0
    %253 = vmatprep.subr.mxu0 0.0
    %254 = vmatpush1.msra.mxu0 0.0
    %255 = vmatprep.subr.mxu0 0.0
    %256 = vmatpush1.msra.mxu0 0.0
    %257 = vmatprep.subr.mxu0 0.0
    %258 = vmatpush1.msra.mxu0 0.0
    %259 = vmatprep.subr.mxu0 0.0
    %260 = vmatpush1.msra.mxu0 0.0
    %261 = vmatprep.subr.mxu0 0.0
    %262 = vmatpush1.msra.mxu0 0.0
    %263 = vmatprep.subr.mxu0 0.0
    %264 = vmatpush1.msra.mxu0 0.0
    %265 = vmatprep.subr.mxu0 0.0
    %266 = vmatpush1.msra.mxu0 0.0
    %267 = vmatprep.subr.mxu0 0.0
    %268 = vmatpush1.msra.mxu0 0.0
    %269 = vmatprep.subr.mxu0 0.0
    %270 = vmatpush1.msra.mxu0 0.0
    %271 = vmatprep.subr.mxu0 0.0
    %272 = vmatpush1.msra.mxu0 0.0
    %273 = vmatprep.subr.mxu0 0.0
    %274 = vmatpush1.msra.mxu0 0.0
    %275 = vmatprep.subr.mxu0 0.0
    %276 = vmatpush1.msra.mxu0 0.0
    %277 = vmatprep.subr.mxu0 0.0
    %278 = vmatpush1.msra.mxu0 0.0
    %279 = vmatprep.subr.mxu0 0.0
    %280 = vmatpush1.msra.mxu0 0.0
    %281 = vmatprep.subr.mxu0 0.0
    %282 = vmatpush1.msra.mxu0 0.0
    %283 = vmatprep.subr.mxu0 0.0
    %284 = vmatpush1.msra.mxu0 0.0
    %285 = vmatprep.mubr.f32.mxu0 0.0
    %286 = vmatmul.mubr.f32.gmra.mrb[0].mxu0 %v210
    %v287 = vpop.f32.mrb[0].mxu0
    %v288 = vadd.f32 %v192, %v287
    %v289 = vpop.f32.mrb[0].mxu0
    %290 = vmatprep.mubr.f32.mxu0 0.0
    %291 = vmatmul.mubr.f32.gmra.mrb[0].mxu0 %v213
    %v292 = vpop.f32.mrb[0].mxu0
    %v293 = vadd.f32 %v197, %v292
    %v294 = vpop.f32.mrb[0].mxu0
    %295 = vmatprep.mubr.f32.mxu0 0.0
    %296 = vmatmul.mubr.f32.gmra.mrb[0].mxu0 %v216
    %v297 = vpop.f32.mrb[0].mxu0
    %v298 = vadd.f32 %v202, %v297
    %v299 = vpop.f32.mrb[0].mxu0
    %300 = vmatprep.mubr.f32.mxu0 0.0
    %301 = vmatmul.mubr.f32.gmra.mrb[0].mxu0 %v219
    %v302 = vpop.f32.mrb[0].mxu0
    %v303 = vadd.f32 %v207, %v302
    %v304 = vpop.f32.mrb[0].mxu0
    %305 = vdwg.mxu0
    %v306 = vmax.f32 %v288, 0.0
    %v307 = vmax.f32 %v293, 0.0
    %v308 = vmax.f32 %v298, 0.0
    %v309 = vmax.f32 %v303, 0.0
    %v310 = vld [vmem:[%s2] sm:$0xff]
    %v311 = vld [vmem:[%s2 + $0x8] sm:$0xff]
    %v312 = vld [vmem:[%s2 + $0x10] sm:$0xff]
    %v313 = vld [vmem:[%s2 + $0x18] sm:$0xff]
    %315 = vset.pattern.permute.xlu0 0
    %316 = vperm.xlu0 %315, %v310
    %v317 = vpop.permute.xlu0 %316
    %320 = vset.pattern.permute.xlu0 0
    %321 = vperm.xlu0 %320, %v311
    %v322 = vpop.permute.xlu0 %321
    %325 = vset.pattern.permute.xlu0 0
    %326 = vperm.xlu0 %325, %v312
    %v327 = vpop.permute.xlu0 %326
    %330 = vset.pattern.permute.xlu0 0
    %331 = vperm.xlu0 %330, %v313
    %v332 = vpop.permute.xlu0 %331
    %v334 = vmul.f32 %v306, %v317
    %v335 = vmul.f32 %v307, %v322
    %v336 = vmul.f32 %v308, %v327
    %v337 = vmul.f32 %v309, %v332
    %v338 = vadd.f32 %v334, %v335
    %v339 = vadd.f32 %v338, %v336
    %v340 = vadd.f32 %v339, %v337
    %v341 = vrot.slane %v340, 4
    %v342 = vadd.f32 %v340, %v341
    %v343 = vrot.slane %v342, 2
    %v344 = vadd.f32 %v342, %v343
    %v345 = vrot.slane %v344, 1
    %v346 = vadd.f32 %v344, %v345
    %s347 = sld [smem:[#allocation2]]
    %v348 = vstv %s347
    %v349 = vadd.f32 %v346, %v348
    %350 = vst [vmem:[#allocation3] sm:$0x1] %v349
    // Predicated region
    $region18: #{tpu_custom_call.1} parent=1 // pred_check
      _
    $region19: #{tpu_custom_call.1} parent=1 // pred_check_branch
      %352 = sbr.rel (0) target = $region21
    $region20: #{tpu_custom_call.1} parent=1 // pred_region
      %s354 = ssub.s32 16, 16
      %355 = vsyncadd [#allocation4], %s354
      %s357 = sshll.u32 [#allocation3], 4
      %s358 = int_to_ptr.vmem [resolvable:$true] %s357
      %360 = dma.vmem_to_hbm [thread:$0]  %s358, 16, %s4, [#allocation4]
    $region21: #{tpu_custom_call.1} parent=1 // pred_fallthru
      _
    // Predicated region
    $region22: #{tpu_custom_call.1} parent=1 // pred_check
      _
    $region23: #{tpu_custom_call.1} parent=1 // pred_check_branch
      %362 = sbr.rel (0) target = $region25
    $region24: #{tpu_custom_call.1} parent=1 // pred_region
      %363 = dma.done [#allocation4], 16
    $region25: #{tpu_custom_call.1} parent=1 // pred_fallthru
      _
    %364 = vsyncpa [#allocation4], 1

</llo_original>
